<compile_context>
chip_gen: v7x
topology: tpu7x:2x2x1
jax: 0.10.0
libtpu: 0.0.40
codegen_flags: <defaults>
</compile_context>

<pallas_src>
import functools

import jax
import jax.numpy as jnp
from jax.experimental import pallas as pl
from jax.experimental.pallas import tpu as pltpu


def _round_up(n: int, m: int) -> int:
    return ((n + m - 1) // m) * m


def _mlp_value_kernel(x_ref, w1e_ref, b1e_ref, w2e_ref, b2_ref, out_ref):
    # fc1 for `pack` interleaved batch columns at once:
    # (rb, 128) @ (128, pack*hidden) on the MXU, f32 accumulate.
    h = jnp.dot(x_ref[...], w1e_ref[...], preferred_element_type=jnp.float32)
    # bias broadcast along rows + ReLU (VPU).
    h = jnp.maximum(h + b1e_ref[...], 0.0)
    # fc2: block-diagonal (pack*hidden, pack) matmul -> one value per batch
    # element, already in the packed output layout.
    v = jnp.dot(h, w2e_ref[...], preferred_element_type=jnp.float32)
    # b2 is a single scalar in SMEM.
    out_ref[...] = (v + b2_ref[0, 0]).astype(out_ref.dtype)


@functools.partial(jax.jit, static_argnames=("batch_tile",))
def state_value_network(x, w1, b1, w2, b2, *, batch_tile: int = 131072):
    """Fused forward pass matching PyTorch StateValueNetwork.

    x : (B, input_size) float32
    w1: (hidden, input_size) float32   -- PyTorch fc1.weight layout
    b1: (hidden,)            float32
    w2: (1, hidden) or (hidden,) f32   -- PyTorch fc2.weight layout
    b2: (1,) or scalar       float32
    returns (B, 1) float32
    """
    B, in_size = x.shape
    hidden = w1.shape[0]

    pack = max(1, 128 // in_size)      # batch elements packed per lane-row
    lane_w = pack * in_size            # 128 when in_size divides 128

    # Pad the batch only up to a multiple of `pack` (tail-only; a no-op copy
    # when B is already pack-aligned), then do the FREE row-major repack.
    b_pad = _round_up(B, pack)
    xp = x if b_pad == B else jnp.pad(x, ((0, b_pad - B), (0, 0)))
    rows = b_pad // pack
    x2 = xp.reshape(rows, lane_w)      # free reshape: no transpose, no HBM pass

    # Pre-expand weights to block-diagonal form (tiny, O(hidden*128) elems) so
    # both layers are lane-dense MXU matmuls directly on the packed layout.
    eye = jnp.eye(pack, dtype=jnp.float32)
    w1e = jnp.kron(eye, w1.astype(jnp.float32).T)                    # (lane_w, pack*hidden)
    w2e = jnp.kron(eye, w2.astype(jnp.float32).reshape(hidden, 1))   # (pack*hidden, pack)
    b1e = jnp.tile(b1.astype(jnp.float32).reshape(-1), pack).reshape(1, pack * hidden)
    b2s = jnp.asarray(b2, jnp.float32).reshape(1, 1)

    # Row-tile selection: as big as VMEM comfortably allows (amortizes the
    # ~0.35us/step overhead), but capped near half the batch so v7x megacore
    # gets >= 2 parallel grid steps.  rb is always a multiple of 8 (sublane
    # constraint) unless a single block covers the whole batch.
    rb_cap = max(8, _round_up(batch_tile, 8 * pack) // pack)
    rb_half = _round_up(pl.cdiv(rows, 2), 8)
    rb = min(rb_cap, rb_half)
    if rb >= rows:
        rb = rows                      # single full-extent block
    grid = (pl.cdiv(rows, rb),)        # last block may be partial (masked)

    out2 = pl.pallas_call(
        _mlp_value_kernel,
        out_shape=jax.ShapeDtypeStruct((rows, pack), jnp.float32),
        grid_spec=pltpu.PrefetchScalarGridSpec(
            num_scalar_prefetch=0,
            grid=grid,
            in_specs=[
                # x streams along the batch grid axis (fully lane-dense tiles).
                pl.BlockSpec((rb, lane_w), lambda i: (i, 0)),
                # Expanded weights/biases: constant block index -> VMEM-resident.
                pl.BlockSpec((lane_w, pack * hidden), lambda i: (0, 0)),
                pl.BlockSpec((1, pack * hidden), lambda i: (0, 0)),
                pl.BlockSpec((pack * hidden, pack), lambda i: (0, 0)),
                # b2: single scalar in SMEM, no VMEM tile / extra DMA.
                pl.BlockSpec(memory_space=pltpu.MemorySpace.SMEM),
            ],
            out_specs=pl.BlockSpec((rb, pack), lambda i: (i, 0)),
        ),
        compiler_params=pltpu.CompilerParams(
            # Batch tiles are independent -> shard across TCs on v7x megacore.
            dimension_semantics=("parallel",),
            # Large tiles need more than the default scoped VMEM (16/32 MiB);
            # 48 MiB fits under v7x's 64 MiB physical and v5e/v6e's 128 MiB.
            vmem_limit_bytes=48 * 1024 * 1024,
        ),
        cost_estimate=pl.CostEstimate(
            flops=2 * rows * lane_w * pack * hidden + 2 * rows * pack * hidden * pack,
            transcendentals=0,
            bytes_accessed=rows * lane_w * 4 + rows * pack * 4
            + w1e.size * 4 + w2e.size * 4,
        ),
    )(x2, w1e, b1e, w2e, b2s)

    vals = out2.reshape(b_pad)         # free when B % pack == 0
    if b_pad != B:
        vals = vals[:B]
    return vals.reshape(B, 1)


def init_params(key, input_size=4, hidden_size=16):
    """Synthetic parameters in PyTorch nn.Linear layout."""
    k1, k2, k3, k4 = jax.random.split(key, 4)
    w1 = jax.random.normal(k1, (hidden_size, input_size), jnp.float32) * 0.1
    b1 = jax.random.normal(k2, (hidden_size,), jnp.float32) * 0.1
    w2 = jax.random.normal(k3, (1, hidden_size), jnp.float32) * 0.1
    b2 = jax.random.normal(k4, (1,), jnp.float32) * 0.1
    return w1, b1, w2, b2


def reference_forward(x, w1, b1, w2, b2):
    h = jnp.maximum(x @ w1.T + b1, 0.0)
    return h @ w2.reshape(-1, 1) + b2.reshape(1, 1)


if __name__ == "__main__":
    key = jax.random.PRNGKey(0)
    kx, kp, kx2 = jax.random.split(key, 3)

    input_size, hidden_size = 4, 16
    w1, b1, w2, b2 = init_params(kp, input_size, hidden_size)

    # Small batch: single grid step, tail pad to one packed row.
    batch = 8
    x = jax.random.normal(kx, (batch, input_size), jnp.float32)
    out = jax.block_until_ready(state_value_network(x, w1, b1, w2, b2))
    ref = reference_forward(x, w1, b1, w2, b2)
    assert out.shape == (batch, 1)
    assert jnp.allclose(out, ref, atol=1e-4, rtol=1e-4)

    # Batch that is not a multiple of 32 and needs 2 grid steps with a masked
    # partial last block (300 -> 320 padded -> 10 packed rows, blocks of 8).
    batch2 = 300
    x2 = jax.random.normal(kx2, (batch2, input_size), jnp.float32)
    out2 = jax.block_until_ready(
        state_value_network(x2, w1, b1, w2, b2, batch_tile=256)
    )
    ref2 = reference_forward(x2, w1, b1, w2, b2)
    assert out2.shape == (batch2, 1)
    assert jnp.allclose(out2, ref2, atol=1e-4, rtol=1e-4)

    print("KERNEL_OK")
</pallas_src>

<mosaic_0001>
module attributes {stable_mosaic.version = 11 : i64} {
  func.func @_mlp_value_kernel(%arg0: i32, %arg1: memref<1x128xf32, #tpu.memory_space<vmem>>, %arg2: memref<128x512xf32, #tpu.memory_space<vmem>>, %arg3: memref<1x512xf32, #tpu.memory_space<vmem>>, %arg4: memref<512x32xf32, #tpu.memory_space<vmem>>, %arg5: memref<1x1xf32, #tpu.memory_space<smem>>, %arg6: memref<1x32xf32, #tpu.memory_space<vmem>>) attributes {dimension_semantics = [#tpu.dimension_semantics<parallel>], iteration_bounds = array<i64: 1>, scalar_prefetch = 0 : i64, scratch_operands = 0 : i64, tpu.core_type = #tpu.core_type<tc>, window_params = [{transform_indices = @transform_0, window_bounds = array<i64: 1, 128>}, {pipeline_mode = #tpu.pipeline_mode<synchronous>, transform_indices = @transform_1, window_bounds = array<i64: 128, 512>}, {pipeline_mode = #tpu.pipeline_mode<synchronous>, transform_indices = @transform_2, window_bounds = array<i64: 1, 512>}, {pipeline_mode = #tpu.pipeline_mode<synchronous>, transform_indices = @transform_3, window_bounds = array<i64: 512, 32>}, {transform_indices = @transform_4, window_bounds = array<i64: 1, 1>}, {transform_indices = @transform_5, window_bounds = array<i64: 1, 32>}]} {
    %c0 = arith.constant 0 : index
    %c0_0 = arith.constant 0 : index
    %0 = vector.load %arg1[%c0, %c0_0] : memref<1x128xf32, #tpu.memory_space<vmem>>, vector<1x128xf32>
    %c0_1 = arith.constant 0 : index
    %c0_2 = arith.constant 0 : index
    %1 = vector.load %arg2[%c0_1, %c0_2] : memref<128x512xf32, #tpu.memory_space<vmem>>, vector<128x512xf32>
    %cst = arith.constant dense<0.000000e+00> : vector<1x512xf32>
    %2 = tpu.matmul %0, %1, %cst {dimension_numbers = #tpu.dot_dimension_numbers<[1], [0], [0], [1], [0, 0, 1, 1], [], []>} : vector<1x128xf32>, vector<128x512xf32>, vector<1x512xf32> -> vector<1x512xf32>
    %c0_3 = arith.constant 0 : index
    %c0_4 = arith.constant 0 : index
    %3 = vector.load %arg3[%c0_3, %c0_4] : memref<1x512xf32, #tpu.memory_space<vmem>>, vector<1x512xf32>
    %4 = arith.addf %2, %3 : vector<1x512xf32>
    %cst_5 = arith.constant 0.000000e+00 : f32
    %5 = vector.broadcast %cst_5 : f32 to vector<1x512xf32>
    %6 = arith.maximumf %4, %5 : vector<1x512xf32>
    %c0_6 = arith.constant 0 : index
    %c0_7 = arith.constant 0 : index
    %7 = vector.load %arg4[%c0_6, %c0_7] : memref<512x32xf32, #tpu.memory_space<vmem>>, vector<512x32xf32>
    %cst_8 = arith.constant dense<0.000000e+00> : vector<1x32xf32>
    %8 = tpu.matmul %6, %7, %cst_8 {dimension_numbers = #tpu.dot_dimension_numbers<[1], [0], [0], [1], [0, 0, 1, 1], [], []>} : vector<1x512xf32>, vector<512x32xf32>, vector<1x32xf32> -> vector<1x32xf32>
    %c0_9 = arith.constant 0 : index
    %c0_10 = arith.constant 0 : index
    %9 = memref.load %arg5[%c0_9, %c0_10] : memref<1x1xf32, #tpu.memory_space<smem>>
    %10 = vector.broadcast %9 : f32 to vector<1x32xf32>
    %11 = arith.addf %8, %10 : vector<1x32xf32>
    %c0_11 = arith.constant 0 : index
    %c0_12 = arith.constant 0 : index
    %12 = vector.load %arg6[%c0_11, %c0_12] : memref<1x32xf32, #tpu.memory_space<vmem>>, vector<1x32xf32>
    tpu.vector_store %arg6[%c0_11, %c0_12], %11 {strides = array<i32>} : memref<1x32xf32, #tpu.memory_space<vmem>>, vector<1x32xf32>,
    return
  }
  func.func @transform_0(%arg0: i32) -> (i32, i32) {
    %c0_i32 = arith.constant 0 : i32
    %c0_i32_0 = arith.constant 0 : i32
    return %arg0, %c0_i32 : i32, i32
  }
  func.func @transform_1(%arg0: i32) -> (i32, i32) {
    %c0_i32 = arith.constant 0 : i32
    %c0_i32_0 = arith.constant 0 : i32
    %c0_i32_1 = arith.constant 0 : i32
    return %c0_i32, %c0_i32_0 : i32, i32
  }
  func.func @transform_2(%arg0: i32) -> (i32, i32) {
    %c0_i32 = arith.constant 0 : i32
    %c0_i32_0 = arith.constant 0 : i32
    %c0_i32_1 = arith.constant 0 : i32
    return %c0_i32, %c0_i32_0 : i32, i32
  }
  func.func @transform_3(%arg0: i32) -> (i32, i32) {
    %c0_i32 = arith.constant 0 : i32
    %c0_i32_0 = arith.constant 0 : i32
    %c0_i32_1 = arith.constant 0 : i32
    return %c0_i32, %c0_i32_0 : i32, i32
  }
  func.func @transform_4(%arg0: i32) -> (i32, i32) {
    %c0_i32 = arith.constant 0 : i32
    %c0_i32_0 = arith.constant 0 : i32
    %c0_i32_1 = arith.constant 0 : i32
    return %c0_i32, %c0_i32_0 : i32, i32
  }
  func.func @transform_5(%arg0: i32) -> (i32, i32) {
    %c0_i32 = arith.constant 0 : i32
    %c0_i32_0 = arith.constant 0 : i32
    return %arg0, %c0_i32 : i32, i32
  }
}

</mosaic_0001>

<llo_original>
// kernel: tile.9
$region0: #{tile.9}
  %s0 = inlined_call_operand.vmem [shape: f32[32,16], index: 0, kind: input, shape index: {}]
  %s1 = inlined_call_operand.vmem [shape: f32[1,512], index: 1, kind: output, shape index: {}]
  $region1: #{tile.9} parent=0
    #allocation0 [shape = 'u8[16384]{0}', space=vmem, size = 0x4000, scoped, tag = 'scoped mem for output reshape']
    %v2 = vld [vmem:[%s0] ss:$8 sm:$0xf]
    %vm3 = vcmask 130048
    %4 = vst.msk [vmem:[#allocation0] ss:$8 sm:$0xf] %vm3, %v2
    %s5 = scalar_lea.vmem %s0, 7
    %v6 = vld [vmem:[%s5] ss:$8 sm:$0xf]
    %7 = vrot.lane.b32.xlu0 %v6, 112
    %v8 = vpop.permute.xlu0 %7
    %vm9 = vcmask 1048448
    %10 = vst.msk [vmem:[#allocation0] ss:$8 sm:$0xf] %vm9, %v8
    %s11 = scalar_lea.vmem %s0, 6
    %v12 = vld [vmem:[%s11] ss:$8 sm:$0xf]
    %13 = vrot.lane.b32.xlu0 %v12, 96
    %v14 = vpop.permute.xlu0 %13
    %vm15 = vcmask 917248
    %16 = vst.msk [vmem:[#allocation0] ss:$8 sm:$0xf] %vm15, %v14
    %s17 = scalar_lea.vmem %s0, 5
    %v18 = vld [vmem:[%s17] ss:$8 sm:$0xf]
    %19 = vrot.lane.b32.xlu0 %v18, 80
    %v20 = vpop.permute.xlu0 %19
    %vm21 = vcmask 786048
    %22 = vst.msk [vmem:[#allocation0] ss:$8 sm:$0xf] %vm21, %v20
    %s23 = scalar_lea.vmem %s0, 4
    %v24 = vld [vmem:[%s23] ss:$8 sm:$0xf]
    %25 = vrot.lane.b32.xlu0 %v24, 64
    %v26 = vpop.permute.xlu0 %25
    %vm27 = vcmask 654848
    %28 = vst.msk [vmem:[#allocation0] ss:$8 sm:$0xf] %vm27, %v26
    %s29 = scalar_lea.vmem %s0, 3
    %v30 = vld [vmem:[%s29] ss:$8 sm:$0xf]
    %31 = vrot.lane.b32.xlu0 %v30, 48
    %v32 = vpop.permute.xlu0 %31
    %vm33 = vcmask 523648
    %34 = vst.msk [vmem:[#allocation0] ss:$8 sm:$0xf] %vm33, %v32
    %s35 = scalar_lea.vmem %s0, 2
    %v36 = vld [vmem:[%s35] ss:$8 sm:$0xf]
    %37 = vrot.lane.b32.xlu0 %v36, 32
    %v38 = vpop.permute.xlu0 %37
    %vm39 = vcmask 392448
    %40 = vst.msk [vmem:[#allocation0] ss:$8 sm:$0xf] %vm39, %v38
    %s41 = scalar_lea.vmem %s0, 1
    %v42 = vld [vmem:[%s41] ss:$8 sm:$0xf]
    %43 = vrot.lane.b32.xlu0 %v42, 16
    %v44 = vpop.permute.xlu0 %43
    %vm45 = vcmask 261248
    %46 = vst.msk [vmem:[#allocation0] ss:$8 sm:$0xf] %vm45, %v44
    %s48 = sshllo.u32 0, 1
    %v50 = vld [vmem:[#allocation0] sm:%s48]
    %s51 = sshllo.u32 0, 1
    %52 = vst [vmem:[%s1] sm:%s51] %v50
    %s53 = scalar_lea.vmem [#allocation0], 8
    %v54 = vld [vmem:[%s53] sm:%s48]
    %s55 = sshllo.u32 0, 1
    %s56 = scalar_lea.vmem %s1, 1
    %57 = vst [vmem:[%s56] sm:%s55] %v54
    %s58 = scalar_lea.vmem [#allocation0], 16
    %v59 = vld [vmem:[%s58] sm:%s48]
    %s60 = sshllo.u32 0, 1
    %s61 = smul.addr 1, 2
    %s62 = scalar_lea.vmem %s1, %s61
    %63 = vst [vmem:[%s62] sm:%s60] %v59
    %s64 = scalar_lea.vmem [#allocation0], 24
    %v65 = vld [vmem:[%s64] sm:%s48]
    %s66 = sshllo.u32 0, 1
    %s67 = smul.addr 1, 3
    %s68 = scalar_lea.vmem %s1, %s67
    %69 = vst [vmem:[%s68] sm:%s66] %v65

// kernel: state_value_network.1
$region0: #{state_value_network.1}
  #allocation0 [shape = 'u32[]', space=smem, size = 0x4, offset = 0x4, fixed_abs, tag = 'smem constant byte address 0x4 - core index']
  #allocation1 [shape = 'u32[144,128]{1,0:T(1,128)}', space=vmem, size = 0x12000, scoped, tag = 'internal scratch']
  #allocation2 [shape = 'f32[1,1]{1,0:T(1,128)S(6)}', space=smem, size = 0x200, scoped, tag = 'scoped memory for state_value_network.1']
  %s0 = inlined_call_operand.vmem [shape: f32[1,128], index: 0, kind: input, shape index: {}]
  %s1 = inlined_call_operand.vmem [shape: f32[128,512], index: 1, kind: input, shape index: {}]
  %s2 = inlined_call_operand.vmem [shape: f32[1,512], index: 2, kind: input, shape index: {}]
  %s3 = inlined_call_operand.vmem [shape: f32[512,32], index: 3, kind: input, shape index: {}]
  %s4 = inlined_call_operand.<no memory space> [shape: f32[1,1], index: 4, kind: input, shape index: {}]
  %s5 = inlined_call_operand.vmem [shape: f32[1,32], index: 5, kind: output, shape index: {}]
  %s6 = sld [smem:[#allocation0]]
  $region30: #{state_value_network.1} parent=0
    _
  %s8 = ssub.s32 1, %s6
  %s9 = scalar_select 0, %s8, %s6
  %10 = sst [smem:[#allocation2]] %s4
  // Predicated region
  $region2: #{state_value_network.1} parent=0 // pred_check
    _
  $region3: #{state_value_network.1} parent=0 // pred_check_branch
    %12 = sbr.rel (0) target = $region5
  $region4: #{state_value_network.1} parent=0 // pred_region
    _
  $region5: #{state_value_network.1} parent=0 // pred_fallthru
    _
  // Predicated region
  $region6: #{state_value_network.1} parent=0 // pred_check
    _
  $region7: #{state_value_network.1} parent=0 // pred_check_branch
    %14 = sbr.rel (0) target = $region9
  $region8: #{state_value_network.1} parent=0 // pred_region
    _
  $region9: #{state_value_network.1} parent=0 // pred_fallthru
    _
  // Predicated region
  $region10: #{state_value_network.1} parent=0 // pred_check
    _
  $region11: #{state_value_network.1} parent=0 // pred_check_branch
    %16 = sbr.rel (0) target = $region13
  $region12: #{state_value_network.1} parent=0 // pred_region
    _
  $region13: #{state_value_network.1} parent=0 // pred_fallthru
    _
  // Predicated region
  $region14: #{state_value_network.1} parent=0 // pred_check
    _
  $region15: #{state_value_network.1} parent=0 // pred_check_branch
    %18 = sbr.rel (0) target = $region17
  $region16: #{state_value_network.1} parent=0 // pred_region
    _
  $region17: #{state_value_network.1} parent=0 // pred_fallthru
    _
  // Predicated region
  $region18: #{state_value_network.1} parent=0 // pred_check
    _
  $region19: #{state_value_network.1} parent=0 // pred_check_branch
    %20 = sbr.rel (0) target = $region21
  $region20: #{state_value_network.1} parent=0 // pred_region
    _
  $region21: #{state_value_network.1} parent=0 // pred_fallthru
    _
  %v21 = vld [vmem:[%s0] sm:$0x1]
  %v22 = vld [vmem:[%s1] sm:$0xff]
  %v23 = vld [vmem:[%s1 + $0x8] sm:$0xff]
  %v24 = vld [vmem:[%s1 + $0x10] sm:$0xff]
  %v25 = vld [vmem:[%s1 + $0x18] sm:$0xff]
  %v26 = vld [vmem:[%s1 + $0x20] sm:$0xff]
  %v27 = vld [vmem:[%s1 + $0x28] sm:$0xff]
  %v28 = vld [vmem:[%s1 + $0x30] sm:$0xff]
  %v29 = vld [vmem:[%s1 + $0x38] sm:$0xff]
  %v30 = vld [vmem:[%s1 + $0x40] sm:$0xff]
  %v31 = vld [vmem:[%s1 + $0x48] sm:$0xff]
  %v32 = vld [vmem:[%s1 + $0x50] sm:$0xff]
  %v33 = vld [vmem:[%s1 + $0x58] sm:$0xff]
  %v34 = vld [vmem:[%s1 + $0x60] sm:$0xff]
  %v35 = vld [vmem:[%s1 + $0x68] sm:$0xff]
  %v36 = vld [vmem:[%s1 + $0x70] sm:$0xff]
  %v37 = vld [vmem:[%s1 + $0x78] sm:$0xff]
  %v38 = vld [vmem:[%s1 + $0x80] sm:$0xff]
  %v39 = vld [vmem:[%s1 + $0x88] sm:$0xff]
  %v40 = vld [vmem:[%s1 + $0x90] sm:$0xff]
  %v41 = vld [vmem:[%s1 + $0x98] sm:$0xff]
  %v42 = vld [vmem:[%s1 + $0xa0] sm:$0xff]
  %v43 = vld [vmem:[%s1 + $0xa8] sm:$0xff]
  %v44 = vld [vmem:[%s1 + $0xb0] sm:$0xff]
  %v45 = vld [vmem:[%s1 + $0xb8] sm:$0xff]
  %v46 = vld [vmem:[%s1 + $0xc0] sm:$0xff]
  %v47 = vld [vmem:[%s1 + $0xc8] sm:$0xff]
  %v48 = vld [vmem:[%s1 + $0xd0] sm:$0xff]
  %v49 = vld [vmem:[%s1 + $0xd8] sm:$0xff]
  %v50 = vld [vmem:[%s1 + $0xe0] sm:$0xff]
  %v51 = vld [vmem:[%s1 + $0xe8] sm:$0xff]
  %v52 = vld [vmem:[%s1 + $0xf0] sm:$0xff]
  %v53 = vld [vmem:[%s1 + $0xf8] sm:$0xff]
  %v54 = vld [vmem:[%s1 + $0x100] sm:$0xff]
  %v55 = vld [vmem:[%s1 + $0x108] sm:$0xff]
  %v56 = vld [vmem:[%s1 + $0x110] sm:$0xff]
  %v57 = vld [vmem:[%s1 + $0x118] sm:$0xff]
  %v58 = vld [vmem:[%s1 + $0x120] sm:$0xff]
  %v59 = vld [vmem:[%s1 + $0x128] sm:$0xff]
  %v60 = vld [vmem:[%s1 + $0x130] sm:$0xff]
  %v61 = vld [vmem:[%s1 + $0x138] sm:$0xff]
  %v62 = vld [vmem:[%s1 + $0x140] sm:$0xff]
  %v63 = vld [vmem:[%s1 + $0x148] sm:$0xff]
  %v64 = vld [vmem:[%s1 + $0x150] sm:$0xff]
  %v65 = vld [vmem:[%s1 + $0x158] sm:$0xff]
  %v66 = vld [vmem:[%s1 + $0x160] sm:$0xff]
  %v67 = vld [vmem:[%s1 + $0x168] sm:$0xff]
  %v68 = vld [vmem:[%s1 + $0x170] sm:$0xff]
  %v69 = vld [vmem:[%s1 + $0x178] sm:$0xff]
  %v70 = vld [vmem:[%s1 + $0x180] sm:$0xff]
  %v71 = vld [vmem:[%s1 + $0x188] sm:$0xff]
  %v72 = vld [vmem:[%s1 + $0x190] sm:$0xff]
  %v73 = vld [vmem:[%s1 + $0x198] sm:$0xff]
  %v74 = vld [vmem:[%s1 + $0x1a0] sm:$0xff]
  %v75 = vld [vmem:[%s1 + $0x1a8] sm:$0xff]
  %v76 = vld [vmem:[%s1 + $0x1b0] sm:$0xff]
  %v77 = vld [vmem:[%s1 + $0x1b8] sm:$0xff]
  %v78 = vld [vmem:[%s1 + $0x1c0] sm:$0xff]
  %v79 = vld [vmem:[%s1 + $0x1c8] sm:$0xff]
  %v80 = vld [vmem:[%s1 + $0x1d0] sm:$0xff]
  %v81 = vld [vmem:[%s1 + $0x1d8] sm:$0xff]
  %v82 = vld [vmem:[%s1 + $0x1e0] sm:$0xff]
  %v83 = vld [vmem:[%s1 + $0x1e8] sm:$0xff]
  %v84 = vld [vmem:[%s1 + $0x1f0] sm:$0xff]
  %v85 = vld [vmem:[%s1 + $0x1f8] sm:$0xff]
  %v86 = vld [vmem:[%s2] sm:$0xf]
  %v88 = vlaneseq
  %v89 = vshrl.u32 %v88, 7
  %v90 = vsub.s32 0, %v89
  %v91 = vrot.slane %v86, %v90
  %v92 = vlaneseq
  %v93 = vshrl.u32 %v92, 7
  %v94 = vsub.s32 1, %v93
  %v95 = vrot.slane %v86, %v94
  %v96 = vlaneseq
  %v97 = vshrl.u32 %v96, 7
  %v98 = vsub.s32 2, %v97
  %v99 = vrot.slane %v86, %v98
  %v100 = vlaneseq
  %v101 = vshrl.u32 %v100, 7
  %v102 = vsub.s32 3, %v101
  %v103 = vrot.slane %v86, %v102
  %108 = vmatprep.subr.mxu0 %v23
  %109 = vmatpush1.msra.mxu0 %v22
  %110 = vmatprep.subr.mxu0 %v27
  %111 = vmatpush1.msra.mxu0 %v26
  %112 = vmatprep.subr.mxu0 %v31
  %113 = vmatpush1.msra.mxu0 %v30
  %114 = vmatprep.subr.mxu0 %v35
  %115 = vmatpush1.msra.mxu0 %v34
  %116 = vmatprep.subr.mxu0 %v39
  %117 = vmatpush1.msra.mxu0 %v38
  %118 = vmatprep.subr.mxu0 %v43
  %119 = vmatpush1.msra.mxu0 %v42
  %120 = vmatprep.subr.mxu0 %v47
  %121 = vmatpush1.msra.mxu0 %v46
  %122 = vmatprep.subr.mxu0 %v51
  %123 = vmatpush1.msra.mxu0 %v50
  %124 = vmatprep.subr.mxu0 %v55
  %125 = vmatpush1.msra.mxu0 %v54
  %126 = vmatprep.subr.mxu0 %v59
  %127 = vmatpush1.msra.mxu0 %v58
  %128 = vmatprep.subr.mxu0 %v63
  %129 = vmatpush1.msra.mxu0 %v62
  %130 = vmatprep.subr.mxu0 %v67
  %131 = vmatpush1.msra.mxu0 %v66
  %132 = vmatprep.subr.mxu0 %v71
  %133 = vmatpush1.msra.mxu0 %v70
  %134 = vmatprep.subr.mxu0 %v75
  %135 = vmatpush1.msra.mxu0 %v74
  %136 = vmatprep.subr.mxu0 %v79
  %137 = vmatpush1.msra.mxu0 %v78
  %138 = vmatprep.subr.mxu0 %v83
  %139 = vmatpush1.msra.mxu0 %v82
  %140 = vmatprep.subr.mxu0 0.0
  %141 = vmatpush1.msra.mxu0 0.0
  %142 = vmatprep.subr.mxu0 0.0
  %143 = vmatpush1.msra.mxu0 0.0
  %144 = vmatprep.subr.mxu0 0.0
  %145 = vmatpush1.msra.mxu0 0.0
  %146 = vmatprep.subr.mxu0 0.0
  %147 = vmatpush1.msra.mxu0 0.0
  %148 = vmatprep.subr.mxu0 0.0
  %149 = vmatpush1.msra.mxu0 0.0
  %150 = vmatprep.subr.mxu0 0.0
  %151 = vmatpush1.msra.mxu0 0.0
  %152 = vmatprep.subr.mxu0 0.0
  %153 = vmatpush1.msra.mxu0 0.0
  %154 = vmatprep.subr.mxu0 0.0
  %155 = vmatpush1.msra.mxu0 0.0
  %156 = vmatprep.subr.mxu0 0.0
  %157 = vmatpush1.msra.mxu0 0.0
  %158 = vmatprep.subr.mxu0 0.0
  %159 = vmatpush1.msra.mxu0 0.0
  %160 = vmatprep.subr.mxu0 0.0
  %161 = vmatpush1.msra.mxu0 0.0
  %162 = vmatprep.subr.mxu0 0.0
  %163 = vmatpush1.msra.mxu0 0.0
  %164 = vmatprep.subr.mxu0 0.0
  %165 = vmatpush1.msra.mxu0 0.0
  %166 = vmatprep.subr.mxu0 0.0
  %167 = vmatpush1.msra.mxu0 0.0
  %168 = vmatprep.subr.mxu0 0.0
  %169 = vmatpush1.msra.mxu0 0.0
  %170 = vmatprep.subr.mxu0 0.0
  %171 = vmatpush1.msra.mxu0 0.0
  %172 = vmatprep.mubr.f32.mxu0 0.0
  %173 = vmatmul.mubr.f32.gmra.mrb[0].mxu0 %v21
  %v174 = vpop.f32.mrb[0].mxu0
  %v175 = vadd.f32 %v91, %v174
  %v176 = vpop.f32.mrb[0].mxu0
  %v177 = vadd.f32 %v95, %v176
  %178 = vdwg.mxu0
  %179 = vmatprep.subr.mxu0 %v25
  %180 = vmatpush1.msra.mxu0 %v24
  %181 = vmatprep.subr.mxu0 %v29
  %182 = vmatpush1.msra.mxu0 %v28
  %183 = vmatprep.subr.mxu0 %v33
  %184 = vmatpush1.msra.mxu0 %v32
  %185 = vmatprep.subr.mxu0 %v37
  %186 = vmatpush1.msra.mxu0 %v36
  %187 = vmatprep.subr.mxu0 %v41
  %188 = vmatpush1.msra.mxu0 %v40
  %189 = vmatprep.subr.mxu0 %v45
  %190 = vmatpush1.msra.mxu0 %v44
  %191 = vmatprep.subr.mxu0 %v49
  %192 = vmatpush1.msra.mxu0 %v48
  %193 = vmatprep.subr.mxu0 %v53
  %194 = vmatpush1.msra.mxu0 %v52
  %195 = vmatprep.subr.mxu0 %v57
  %196 = vmatpush1.msra.mxu0 %v56
  %197 = vmatprep.subr.mxu0 %v61
  %198 = vmatpush1.msra.mxu0 %v60
  %199 = vmatprep.subr.mxu0 %v65
  %200 = vmatpush1.msra.mxu0 %v64
  %201 = vmatprep.subr.mxu0 %v69
  %202 = vmatpush1.msra.mxu0 %v68
  %203 = vmatprep.subr.mxu0 %v73
  %204 = vmatpush1.msra.mxu0 %v72
  %205 = vmatprep.subr.mxu0 %v77
  %206 = vmatpush1.msra.mxu0 %v76
  %207 = vmatprep.subr.mxu0 %v81
  %208 = vmatpush1.msra.mxu0 %v80
  %209 = vmatprep.subr.mxu0 %v85
  %210 = vmatpush1.msra.mxu0 %v84
  %211 = vmatprep.subr.mxu0 0.0
  %212 = vmatpush1.msra.mxu0 0.0
  %213 = vmatprep.subr.mxu0 0.0
  %214 = vmatpush1.msra.mxu0 0.0
  %215 = vmatprep.subr.mxu0 0.0
  %216 = vmatpush1.msra.mxu0 0.0
  %217 = vmatprep.subr.mxu0 0.0
  %218 = vmatpush1.msra.mxu0 0.0
  %219 = vmatprep.subr.mxu0 0.0
  %220 = vmatpush1.msra.mxu0 0.0
  %221 = vmatprep.subr.mxu0 0.0
  %222 = vmatpush1.msra.mxu0 0.0
  %223 = vmatprep.subr.mxu0 0.0
  %224 = vmatpush1.msra.mxu0 0.0
  %225 = vmatprep.subr.mxu0 0.0
  %226 = vmatpush1.msra.mxu0 0.0
  %227 = vmatprep.subr.mxu0 0.0
  %228 = vmatpush1.msra.mxu0 0.0
  %229 = vmatprep.subr.mxu0 0.0
  %230 = vmatpush1.msra.mxu0 0.0
  %231 = vmatprep.subr.mxu0 0.0
  %232 = vmatpush1.msra.mxu0 0.0
  %233 = vmatprep.subr.mxu0 0.0
  %234 = vmatpush1.msra.mxu0 0.0
  %235 = vmatprep.subr.mxu0 0.0
  %236 = vmatpush1.msra.mxu0 0.0
  %237 = vmatprep.subr.mxu0 0.0
  %238 = vmatpush1.msra.mxu0 0.0
  %239 = vmatprep.subr.mxu0 0.0
  %240 = vmatpush1.msra.mxu0 0.0
  %241 = vmatprep.subr.mxu0 0.0
  %242 = vmatpush1.msra.mxu0 0.0
  %243 = vmatprep.mubr.f32.mxu0 0.0
  %244 = vmatmul.mubr.f32.gmra.mrb[0].mxu0 %v21
  %v245 = vpop.f32.mrb[0].mxu0
  %v246 = vadd.f32 %v99, %v245
  %v247 = vpop.f32.mrb[0].mxu0
  %v248 = vadd.f32 %v103, %v247
  %249 = vdwg.mxu0
  %v250 = vmax.f32 %v175, 0.0
  %v251 = vmax.f32 %v177, 0.0
  %v252 = vmax.f32 %v246, 0.0
  %v253 = vmax.f32 %v248, 0.0
  %v254 = vld [vmem:[%s3] sm:$0xff]
  %v255 = vld [vmem:[%s3 + $0x8] sm:$0xff]
  %v256 = vld [vmem:[%s3 + $0x10] sm:$0xff]
  %v257 = vld [vmem:[%s3 + $0x18] sm:$0xff]
  %v258 = vld [vmem:[%s3 + $0x20] sm:$0xff]
  %v259 = vld [vmem:[%s3 + $0x28] sm:$0xff]
  %v260 = vld [vmem:[%s3 + $0x30] sm:$0xff]
  %v261 = vld [vmem:[%s3 + $0x38] sm:$0xff]
  %v262 = vld [vmem:[%s3 + $0x40] sm:$0xff]
  %v263 = vld [vmem:[%s3 + $0x48] sm:$0xff]
  %v264 = vld [vmem:[%s3 + $0x50] sm:$0xff]
  %v265 = vld [vmem:[%s3 + $0x58] sm:$0xff]
  %v266 = vld [vmem:[%s3 + $0x60] sm:$0xff]
  %v267 = vld [vmem:[%s3 + $0x68] sm:$0xff]
  %v268 = vld [vmem:[%s3 + $0x70] sm:$0xff]
  %v269 = vld [vmem:[%s3 + $0x78] sm:$0xff]
  %v270 = vld [vmem:[%s3 + $0x80] sm:$0xff]
  %v271 = vld [vmem:[%s3 + $0x88] sm:$0xff]
  %v272 = vld [vmem:[%s3 + $0x90] sm:$0xff]
  %v273 = vld [vmem:[%s3 + $0x98] sm:$0xff]
  %v274 = vld [vmem:[%s3 + $0xa0] sm:$0xff]
  %v275 = vld [vmem:[%s3 + $0xa8] sm:$0xff]
  %v276 = vld [vmem:[%s3 + $0xb0] sm:$0xff]
  %v277 = vld [vmem:[%s3 + $0xb8] sm:$0xff]
  %v278 = vld [vmem:[%s3 + $0xc0] sm:$0xff]
  %v279 = vld [vmem:[%s3 + $0xc8] sm:$0xff]
  %v280 = vld [vmem:[%s3 + $0xd0] sm:$0xff]
  %v281 = vld [vmem:[%s3 + $0xd8] sm:$0xff]
  %v282 = vld [vmem:[%s3 + $0xe0] sm:$0xff]
  %v283 = vld [vmem:[%s3 + $0xe8] sm:$0xff]
  %v284 = vld [vmem:[%s3 + $0xf0] sm:$0xff]
  %v285 = vld [vmem:[%s3 + $0xf8] sm:$0xff]
  %v286 = vld [vmem:[%s3 + $0x100] sm:$0xff]
  %v287 = vld [vmem:[%s3 + $0x108] sm:$0xff]
  %v288 = vld [vmem:[%s3 + $0x110] sm:$0xff]
  %v289 = vld [vmem:[%s3 + $0x118] sm:$0xff]
  %v290 = vld [vmem:[%s3 + $0x120] sm:$0xff]
  %v291 = vld [vmem:[%s3 + $0x128] sm:$0xff]
  %v292 = vld [vmem:[%s3 + $0x130] sm:$0xff]
  %v293 = vld [vmem:[%s3 + $0x138] sm:$0xff]
  %v294 = vld [vmem:[%s3 + $0x140] sm:$0xff]
  %v295 = vld [vmem:[%s3 + $0x148] sm:$0xff]
  %v296 = vld [vmem:[%s3 + $0x150] sm:$0xff]
  %v297 = vld [vmem:[%s3 + $0x158] sm:$0xff]
  %v298 = vld [vmem:[%s3 + $0x160] sm:$0xff]
  %v299 = vld [vmem:[%s3 + $0x168] sm:$0xff]
  %v300 = vld [vmem:[%s3 + $0x170] sm:$0xff]
  %v301 = vld [vmem:[%s3 + $0x178] sm:$0xff]
  %v302 = vld [vmem:[%s3 + $0x180] sm:$0xff]
  %v303 = vld [vmem:[%s3 + $0x188] sm:$0xff]
  %v304 = vld [vmem:[%s3 + $0x190] sm:$0xff]
  %v305 = vld [vmem:[%s3 + $0x198] sm:$0xff]
  %v306 = vld [vmem:[%s3 + $0x1a0] sm:$0xff]
  %v307 = vld [vmem:[%s3 + $0x1a8] sm:$0xff]
  %v308 = vld [vmem:[%s3 + $0x1b0] sm:$0xff]
  %v309 = vld [vmem:[%s3 + $0x1b8] sm:$0xff]
  %v310 = vld [vmem:[%s3 + $0x1c0] sm:$0xff]
  %v311 = vld [vmem:[%s3 + $0x1c8] sm:$0xff]
  %v312 = vld [vmem:[%s3 + $0x1d0] sm:$0xff]
  %v313 = vld [vmem:[%s3 + $0x1d8] sm:$0xff]
  %v314 = vld [vmem:[%s3 + $0x1e0] sm:$0xff]
  %v315 = vld [vmem:[%s3 + $0x1e8] sm:$0xff]
  %v316 = vld [vmem:[%s3 + $0x1f0] sm:$0xff]
  %v317 = vld [vmem:[%s3 + $0x1f8] sm:$0xff]
  %s318 = sld [smem:[#allocation2]]
  %v319 = vstv %s318
  %320 = vmatprep.subr.mxu0 0.0
  %321 = vmatpush1.msra.mxu0 %v254
  %322 = vmatprep.subr.mxu0 0.0
  %323 = vmatpush1.msra.mxu0 %v255
  %324 = vmatprep.subr.mxu0 0.0
  %325 = vmatpush1.msra.mxu0 %v256
  %326 = vmatprep.subr.mxu0 0.0
  %327 = vmatpush1.msra.mxu0 %v257
  %328 = vmatprep.subr.mxu0 0.0
  %329 = vmatpush1.msra.mxu0 %v258
  %330 = vmatprep.subr.mxu0 0.0
  %331 = vmatpush1.msra.mxu0 %v259
  %332 = vmatprep.subr.mxu0 0.0
  %333 = vmatpush1.msra.mxu0 %v260
  %334 = vmatprep.subr.mxu0 0.0
  %335 = vmatpush1.msra.mxu0 %v261
  %336 = vmatprep.subr.mxu0 0.0
  %337 = vmatpush1.msra.mxu0 %v262
  %338 = vmatprep.subr.mxu0 0.0
  %339 = vmatpush1.msra.mxu0 %v263
  %340 = vmatprep.subr.mxu0 0.0
  %341 = vmatpush1.msra.mxu0 %v264
  %342 = vmatprep.subr.mxu0 0.0
  %343 = vmatpush1.msra.mxu0 %v265
  %344 = vmatprep.subr.mxu0 0.0
  %345 = vmatpush1.msra.mxu0 %v266
  %346 = vmatprep.subr.mxu0 0.0
  %347 = vmatpush1.msra.mxu0 %v267
  %348 = vmatprep.subr.mxu0 0.0
  %349 = vmatpush1.msra.mxu0 %v268
  %350 = vmatprep.subr.mxu0 0.0
  %351 = vmatpush1.msra.mxu0 %v269
  %352 = vmatprep.subr.mxu0 0.0
  %353 = vmatpush1.msra.mxu0 %v270
  %354 = vmatprep.subr.mxu0 0.0
  %355 = vmatpush1.msra.mxu0 %v271
  %356 = vmatprep.subr.mxu0 0.0
  %357 = vmatpush1.msra.mxu0 %v272
  %358 = vmatprep.subr.mxu0 0.0
  %359 = vmatpush1.msra.mxu0 %v273
  %360 = vmatprep.subr.mxu0 0.0
  %361 = vmatpush1.msra.mxu0 %v274
  %362 = vmatprep.subr.mxu0 0.0
  %363 = vmatpush1.msra.mxu0 %v275
  %364 = vmatprep.subr.mxu0 0.0
  %365 = vmatpush1.msra.mxu0 %v276
  %366 = vmatprep.subr.mxu0 0.0
  %367 = vmatpush1.msra.mxu0 %v277
  %368 = vmatprep.subr.mxu0 0.0
  %369 = vmatpush1.msra.mxu0 %v278
  %370 = vmatprep.subr.mxu0 0.0
  %371 = vmatpush1.msra.mxu0 %v279
  %372 = vmatprep.subr.mxu0 0.0
  %373 = vmatpush1.msra.mxu0 %v280
  %374 = vmatprep.subr.mxu0 0.0
  %375 = vmatpush1.msra.mxu0 %v281
  %376 = vmatprep.subr.mxu0 0.0
  %377 = vmatpush1.msra.mxu0 %v282
  %378 = vmatprep.subr.mxu0 0.0
  %379 = vmatpush1.msra.mxu0 %v283
  %380 = vmatprep.subr.mxu0 0.0
  %381 = vmatpush1.msra.mxu0 %v284
  %382 = vmatprep.subr.mxu0 0.0
  %383 = vmatpush1.msra.mxu0 %v285
  %384 = vmatprep.mubr.f32.mxu0 %v251
  %385 = vmatmul.mubr.f32.gmra.mrb[0].mxu0 %v250
  %v386 = vpop.f32.mrb[0].mxu0
  %v387 = vadd.f32 %v319, %v386
  %v388 = vpop.f32.mrb[0].mxu0
  %389 = vdwg.mxu0
  %390 = vmatprep.subr.mxu0 0.0
  %391 = vmatpush1.msra.mxu0 %v286
  %392 = vmatprep.subr.mxu0 0.0
  %393 = vmatpush1.msra.mxu0 %v287
  %394 = vmatprep.subr.mxu0 0.0
  %395 = vmatpush1.msra.mxu0 %v288
  %396 = vmatprep.subr.mxu0 0.0
  %397 = vmatpush1.msra.mxu0 %v289
  %398 = vmatprep.subr.mxu0 0.0
  %399 = vmatpush1.msra.mxu0 %v290
  %400 = vmatprep.subr.mxu0 0.0
  %401 = vmatpush1.msra.mxu0 %v291
  %402 = vmatprep.subr.mxu0 0.0
  %403 = vmatpush1.msra.mxu0 %v292
  %404 = vmatprep.subr.mxu0 0.0
  %405 = vmatpush1.msra.mxu0 %v293
  %406 = vmatprep.subr.mxu0 0.0
  %407 = vmatpush1.msra.mxu0 %v294
  %408 = vmatprep.subr.mxu0 0.0
  %409 = vmatpush1.msra.mxu0 %v295
  %410 = vmatprep.subr.mxu0 0.0
  %411 = vmatpush1.msra.mxu0 %v296
  %412 = vmatprep.subr.mxu0 0.0
  %413 = vmatpush1.msra.mxu0 %v297
  %414 = vmatprep.subr.mxu0 0.0
  %415 = vmatpush1.msra.mxu0 %v298
  %416 = vmatprep.subr.mxu0 0.0
  %417 = vmatpush1.msra.mxu0 %v299
  %418 = vmatprep.subr.mxu0 0.0
  %419 = vmatpush1.msra.mxu0 %v300
  %420 = vmatprep.subr.mxu0 0.0
  %421 = vmatpush1.msra.mxu0 %v301
  %422 = vmatprep.subr.mxu0 0.0
  %423 = vmatpush1.msra.mxu0 %v302
  %424 = vmatprep.subr.mxu0 0.0
  %425 = vmatpush1.msra.mxu0 %v303
  %426 = vmatprep.subr.mxu0 0.0
  %427 = vmatpush1.msra.mxu0 %v304
  %428 = vmatprep.subr.mxu0 0.0
  %429 = vmatpush1.msra.mxu0 %v305
  %430 = vmatprep.subr.mxu0 0.0
  %431 = vmatpush1.msra.mxu0 %v306
  %432 = vmatprep.subr.mxu0 0.0
  %433 = vmatpush1.msra.mxu0 %v307
  %434 = vmatprep.subr.mxu0 0.0
  %435 = vmatpush1.msra.mxu0 %v308
  %436 = vmatprep.subr.mxu0 0.0
  %437 = vmatpush1.msra.mxu0 %v309
  %438 = vmatprep.subr.mxu0 0.0
  %439 = vmatpush1.msra.mxu0 %v310
  %440 = vmatprep.subr.mxu0 0.0
  %441 = vmatpush1.msra.mxu0 %v311
  %442 = vmatprep.subr.mxu0 0.0
  %443 = vmatpush1.msra.mxu0 %v312
  %444 = vmatprep.subr.mxu0 0.0
  %445 = vmatpush1.msra.mxu0 %v313
  %446 = vmatprep.subr.mxu0 0.0
  %447 = vmatpush1.msra.mxu0 %v314
  %448 = vmatprep.subr.mxu0 0.0
  %449 = vmatpush1.msra.mxu0 %v315
  %450 = vmatprep.subr.mxu0 0.0
  %451 = vmatpush1.msra.mxu0 %v316
  %452 = vmatprep.subr.mxu0 0.0
  %453 = vmatpush1.msra.mxu0 %v317
  %454 = vmatprep.mubr.f32.mxu0 %v253
  %455 = vmatmul.mubr.f32.gmra.mrb[0].mxu0 %v252
  %v456 = vpop.f32.mrb[0].mxu0
  %v457 = vadd.f32 %v387, %v456
  %v458 = vpop.f32.mrb[0].mxu0
  %459 = vdwg.mxu0
  %vm460 = vcmask 253952
  %461 = vst.msk [vmem:[%s5] sm:$0x1] %vm460, %v457
  // Predicated region
  $region22: #{state_value_network.1} parent=0 // pred_check
    _
  $region23: #{state_value_network.1} parent=0 // pred_check_branch
    %463 = sbr.rel (0) target = $region25
  $region24: #{state_value_network.1} parent=0 // pred_region
    _
  $region25: #{state_value_network.1} parent=0 // pred_fallthru
    _
  // Predicated region
  $region26: #{state_value_network.1} parent=0 // pred_check
    _
  $region27: #{state_value_network.1} parent=0 // pred_check_branch
    %465 = sbr.rel (0) target = $region29
  $region28: #{state_value_network.1} parent=0 // pred_region
    _
  $region29: #{state_value_network.1} parent=0 // pred_fallthru
    _

</llo_original>
